<compile_context>
chip_gen: v6e
topology: v6e:2x2x1
jax: 0.10.0
libtpu: 0.0.40
codegen_flags: <defaults>
</compile_context>

<pallas_src>
import math

import jax
import jax.numpy as jnp
from jax.experimental import pallas as pl
from jax.experimental.pallas import tpu as pltpu


# ---------------------------------------------------------------------------
# Linear (no bias):  y = x @ w,   x:(M, K)  w:(K, N)
# ---------------------------------------------------------------------------
def _linear_kernel(x_ref, w_ref, o_ref):
    o_ref[...] = jnp.dot(
        x_ref[...], w_ref[...], preferred_element_type=jnp.float32
    ).astype(o_ref.dtype)


def linear_nobias(x2d, w):
    M, K = x2d.shape
    K2, N = w.shape
    assert K == K2
    # Lane-dense (full-N) output tile. Tile M only when it splits cleanly into
    # 128-row blocks; otherwise take the whole (small) M in a single block.
    tm = 128 if (M >= 128 and M % 128 == 0) else M
    grid = (M // tm,)
    return pl.pallas_call(
        _linear_kernel,
        out_shape=jax.ShapeDtypeStruct((M, N), x2d.dtype),
        grid=grid,
        in_specs=[
            pl.BlockSpec((tm, K), lambda i: (i, 0)),
            pl.BlockSpec((K, N), lambda i: (0, 0)),
        ],
        out_specs=pl.BlockSpec((tm, N), lambda i: (i, 0)),
        compiler_params=pltpu.CompilerParams(dimension_semantics=("parallel",)),
    )(x2d, w)


# ---------------------------------------------------------------------------
# Fused multi-head attention core.  One grid step = one batch element, all heads.
#   q,k,v      : (B, H, S, d_k)
#   attn_weight: (B, H, S, S)   (optional, subtracted from scores)
#   mask       : (B, S) bool, True = padding key position (optional)
# Returns       (B, H, S, d_k)
# ---------------------------------------------------------------------------
def _make_attention_kernel(has_weight, has_mask, sm_scale):
    def kernel(*refs):
        i = 0
        q_ref = refs[i]; i += 1
        k_ref = refs[i]; i += 1
        v_ref = refs[i]; i += 1
        w_ref = None
        m_ref = None
        if has_weight:
            w_ref = refs[i]; i += 1
        if has_mask:
            m_ref = refs[i]; i += 1
        o_ref = refs[i]

        q = q_ref[0].astype(jnp.float32)   # (H, Sq, Dk)
        k = k_ref[0].astype(jnp.float32)   # (H, Sk, Dk)
        v = v_ref[0].astype(jnp.float32)   # (H, Sk, Dk)

        # scores = Q K^T / sqrt(d_k)   -> (H, Sq, Sk), batched over heads on MXU.
        scores = jnp.einsum(
            "hqd,hkd->hqk", q, k, preferred_element_type=jnp.float32
        ) * sm_scale

        if has_mask:
            pad = m_ref[...]                       # (1, 1, Sk), 1.0 = pad
            scores = jnp.where(pad > 0.5, -jnp.inf, scores)
        if has_weight:
            scores = scores - w_ref[0].astype(jnp.float32)

        # softmax over key axis
        scores_max = jnp.max(scores, axis=-1, keepdims=True)
        unnorm = jnp.exp(scores - scores_max)
        denom = jnp.sum(unnorm, axis=-1, keepdims=True)
        p = unnorm * pl.reciprocal(denom)
        # TODO(synk): nn.Dropout(p=0.1) on p_attn omitted (eval-mode forward).

        ctx = jnp.einsum("hqk,hkd->hqd", p, v, preferred_element_type=jnp.float32)
        o_ref[...] = ctx[None].astype(o_ref.dtype)

    return kernel


def fused_attention(q, k, v, attn_weight=None, mask=None):
    B, H, Sq, Dk = q.shape
    Sk = k.shape[2]
    sm_scale = 1.0 / math.sqrt(Dk)

    has_weight = attn_weight is not None
    has_mask = mask is not None

    in_specs = [
        pl.BlockSpec((1, H, Sq, Dk), lambda b: (b, 0, 0, 0)),
        pl.BlockSpec((1, H, Sk, Dk), lambda b: (b, 0, 0, 0)),
        pl.BlockSpec((1, H, Sk, Dk), lambda b: (b, 0, 0, 0)),
    ]
    args = [q, k, v]
    if has_weight:
        in_specs.append(pl.BlockSpec((1, H, Sq, Sk), lambda b: (b, 0, 0, 0)))
        args.append(attn_weight)
    if has_mask:
        mask_f = mask.astype(jnp.float32).reshape(B, 1, Sk)  # 1.0 = pad
        in_specs.append(pl.BlockSpec((1, 1, Sk), lambda b: (b, 0, 0)))
        args.append(mask_f)

    kernel = _make_attention_kernel(has_weight, has_mask, sm_scale)
    return pl.pallas_call(
        kernel,
        out_shape=jax.ShapeDtypeStruct((B, H, Sq, Dk), q.dtype),
        grid=(B,),
        in_specs=in_specs,
        out_specs=pl.BlockSpec((1, H, Sq, Dk), lambda b: (b, 0, 0, 0)),
        compiler_params=pltpu.CompilerParams(dimension_semantics=("parallel",)),
    )(*args)


# ---------------------------------------------------------------------------
# Full module forward.
#   query/key/value: (B, S, d_model);  wq/wk/wv/wo: (d_model, d_model) in
#   (in, out) layout (i.e. y = x @ w, equivalent to torch's x @ W.T).
# ---------------------------------------------------------------------------
def weighted_multi_headed_attention(query, key, value, wq, wk, wv, wo, nhead,
                                    attn_weight=None, mask=None):
    B, Sq, D = query.shape
    assert D % nhead == 0
    d_k = D // nhead

    def project(x, w):
        Bx, Sx, _ = x.shape
        y = linear_nobias(x.reshape(Bx * Sx, D), w)
        return y.reshape(Bx, Sx, nhead, d_k).transpose(0, 2, 1, 3)  # (B, H, S, d_k)

    q = project(query, wq)
    k = project(key, wk)
    v = project(value, wv)

    ctx = fused_attention(q, k, v, attn_weight=attn_weight, mask=mask)  # (B,H,Sq,dk)
    ctx2d = ctx.transpose(0, 2, 1, 3).reshape(B * Sq, D)                # merge heads
    out = linear_nobias(ctx2d, wo)
    return out.reshape(B, Sq, D)


# ---------------------------------------------------------------------------
# Pure-JAX reference (mirrors the PyTorch forward, dropout in eval mode).
# ---------------------------------------------------------------------------
def _ref_forward(query, key, value, wq, wk, wv, wo, nhead,
                 attn_weight=None, mask=None):
    B, Sq, D = query.shape
    d_k = D // nhead

    def proj(x, w):
        return (x @ w).reshape(B, -1, nhead, d_k).transpose(0, 2, 1, 3)

    q, k, v = proj(query, wq), proj(key, wk), proj(value, wv)
    scores = jnp.einsum("bhqd,bhkd->bhqk", q, k) / math.sqrt(d_k)
    if mask is not None:
        scores = jnp.where(mask[:, None, None, :], -jnp.inf, scores)
    if attn_weight is not None:
        scores = scores - attn_weight
    p = jax.nn.softmax(scores, axis=-1)
    ctx = jnp.einsum("bhqk,bhkd->bhqd", p, v)
    ctx = ctx.transpose(0, 2, 1, 3).reshape(B, Sq, D)
    return ctx @ wo


if __name__ == "__main__":
    rng = jax.random.PRNGKey(0)
    B, S, d_model, nhead = 2, 8, 32, 4
    ks = jax.random.split(rng, 8)
    wscale = 1.0 / math.sqrt(d_model)

    query = jax.random.normal(ks[0], (B, S, d_model), jnp.float32)
    key_x = jax.random.normal(ks[1], (B, S, d_model), jnp.float32)
    value = jax.random.normal(ks[2], (B, S, d_model), jnp.float32)
    wq = jax.random.normal(ks[3], (d_model, d_model), jnp.float32) * wscale
    wk = jax.random.normal(ks[4], (d_model, d_model), jnp.float32) * wscale
    wv = jax.random.normal(ks[5], (d_model, d_model), jnp.float32) * wscale
    wo = jax.random.normal(ks[6], (d_model, d_model), jnp.float32) * wscale
    attn_weight = jax.random.uniform(ks[7], (B, nhead, S, S), jnp.float32)

    # Key-padding mask: True = pad. Row 0 keeps 6 tokens, row 1 keeps all 8.
    lengths = jnp.array([[6], [8]], dtype=jnp.int32)
    mask = jnp.arange(S, dtype=jnp.int32)[None, :] >= lengths  # (B, S) bool

    # Full path: mask + attn_weight.
    out = weighted_multi_headed_attention(
        query, key_x, value, wq, wk, wv, wo, nhead,
        attn_weight=attn_weight, mask=mask)
    jax.block_until_ready(out)
    ref = _ref_forward(query, key_x, value, wq, wk, wv, wo, nhead,
                       attn_weight=attn_weight, mask=mask)
    assert out.shape == (B, S, d_model)
    assert jnp.allclose(out, ref, atol=1e-4, rtol=1e-4), \
        float(jnp.max(jnp.abs(out - ref)))

    # Plain path: no mask, no attn_weight (exercises the no-extra-DMA variant).
    out2 = weighted_multi_headed_attention(
        query, key_x, value, wq, wk, wv, wo, nhead)
    jax.block_until_ready(out2)
    ref2 = _ref_forward(query, key_x, value, wq, wk, wv, wo, nhead)
    assert jnp.allclose(out2, ref2, atol=1e-4, rtol=1e-4), \
        float(jnp.max(jnp.abs(out2 - ref2)))

    print("KERNEL_OK")
</pallas_src>

<mosaic_0001>
module attributes {stable_mosaic.version = 11 : i64} {
  func.func @_linear_kernel(%arg0: i32, %arg1: memref<16x32xf32, #tpu.memory_space<vmem>>, %arg2: memref<32x32xf32, #tpu.memory_space<vmem>>, %arg3: memref<16x32xf32, #tpu.memory_space<vmem>>) attributes {dimension_semantics = [#tpu.dimension_semantics<parallel>], iteration_bounds = array<i64: 1>, scalar_prefetch = 0 : i64, scratch_operands = 0 : i64, tpu.core_type = #tpu.core_type<tc>, window_params = [{transform_indices = @transform_0, window_bounds = array<i64: 16, 32>}, {pipeline_mode = #tpu.pipeline_mode<synchronous>, transform_indices = @transform_1, window_bounds = array<i64: 32, 32>}, {transform_indices = @transform_2, window_bounds = array<i64: 16, 32>}]} {
    %c0 = arith.constant 0 : index
    %c0_0 = arith.constant 0 : index
    %0 = vector.load %arg1[%c0, %c0_0] : memref<16x32xf32, #tpu.memory_space<vmem>>, vector<16x32xf32>
    %c0_1 = arith.constant 0 : index
    %c0_2 = arith.constant 0 : index
    %1 = vector.load %arg2[%c0_1, %c0_2] : memref<32x32xf32, #tpu.memory_space<vmem>>, vector<32x32xf32>
    %cst = arith.constant dense<0.000000e+00> : vector<16x32xf32>
    %2 = tpu.matmul %0, %1, %cst {dimension_numbers = #tpu.dot_dimension_numbers<[1], [0], [0], [1], [0, 0, 1, 1], [], []>} : vector<16x32xf32>, vector<32x32xf32>, vector<16x32xf32> -> vector<16x32xf32>
    %c0_3 = arith.constant 0 : index
    %c0_4 = arith.constant 0 : index
    %3 = vector.load %arg3[%c0_3, %c0_4] : memref<16x32xf32, #tpu.memory_space<vmem>>, vector<16x32xf32>
    tpu.vector_store %arg3[%c0_3, %c0_4], %2 {strides = array<i32>} : memref<16x32xf32, #tpu.memory_space<vmem>>, vector<16x32xf32>,
    return
  }
  func.func @transform_0(%arg0: i32) -> (i32, i32) {
    %c0_i32 = arith.constant 0 : i32
    %c0_i32_0 = arith.constant 0 : i32
    return %arg0, %c0_i32 : i32, i32
  }
  func.func @transform_1(%arg0: i32) -> (i32, i32) {
    %c0_i32 = arith.constant 0 : i32
    %c0_i32_0 = arith.constant 0 : i32
    %c0_i32_1 = arith.constant 0 : i32
    return %c0_i32, %c0_i32_0 : i32, i32
  }
  func.func @transform_2(%arg0: i32) -> (i32, i32) {
    %c0_i32 = arith.constant 0 : i32
    %c0_i32_0 = arith.constant 0 : i32
    return %arg0, %c0_i32 : i32, i32
  }
}

</mosaic_0001>

<llo_original>
// kernel: tpu_custom_call.1
$region0: #{tpu_custom_call.1}
  #allocation0 [shape = 'u32[]', space=smem, size = 0x4, offset = 0x4, fixed_abs, tag = 'smem constant byte address 0x4 - core index']
  #allocation1 [shape = 'u32[144,128]{1,0:T(1,128)}', space=vmem, size = 0x12000, scoped, tag = 'internal scratch']
  %s0 = inlined_call_operand.hbm [shape: f32[16,32], index: 0, kind: input, shape index: {}]
  %s1 = inlined_call_operand.hbm [shape: f32[32,32], index: 1, kind: input, shape index: {}]
  %s2 = inlined_call_operand.hbm [shape: f32[16,32], index: 2, kind: output, shape index: {}]
  %s3 = sld [smem:[#allocation0]]
  $region26: #{tpu_custom_call.1} parent=0
    _
  %s5 = ssub.s32 1, %s3
  %s6 = scalar_select 0, %s5, %s3
  $region1: #{tpu_custom_call.1} parent=0
    #allocation2 [shape = 'u8[8192]{0}', space=vmem, size = 0x2000, scoped, tag = 'input window, operand 0, single buffered']
    #allocation3 [shape = 's32[1]{0}', space=sflag, size = 0x4, scoped, tag = 'scoped memory for tpu_custom_call.1']
    #allocation4 [shape = 's32[1]{0}', space=sflag, size = 0x4, scoped, tag = 'scoped memory for tpu_custom_call.1']
    #allocation5 [shape = 'u8[16384]{0}', space=vmem, size = 0x4000, scoped, tag = 'input window, operand 1, single buffered']
    #allocation6 [shape = 's32[1]{0}', space=sflag, size = 0x4, scoped, tag = 'scoped memory for tpu_custom_call.1']
    #allocation7 [shape = 'u8[8192]{0}', space=vmem, size = 0x2000, scoped, tag = 'output window, operand 0, single buffered']
    %7 = vsyncpa [#allocation3], 0
    %8 = vsyncpa [#allocation6], 0
    %9 = vsyncpa [#allocation4], 0
    // Predicated region
    $region2: #{tpu_custom_call.1} parent=1 // pred_check
      _
    $region3: #{tpu_custom_call.1} parent=1 // pred_check_branch
      %11 = sbr.rel (0) target = $region5
    $region4: #{tpu_custom_call.1} parent=1 // pred_region
      %s13 = ssub.s32 256, 256
      %14 = vsyncadd [#allocation3], %s13
      %s15 = sshll.u32 [#allocation2], 4
      %s16 = int_to_ptr.vmem [resolvable:$true] %s15
      %21 = dma.hbm_to_vmem [thread:$0]  %s0, 256, %s16, [#allocation3], 128, 128, 8
    $region5: #{tpu_custom_call.1} parent=1 // pred_fallthru
      _
    // Predicated region
    $region6: #{tpu_custom_call.1} parent=1 // pred_check
      _
    $region7: #{tpu_custom_call.1} parent=1 // pred_check_branch
      %23 = sbr.rel (0) target = $region9
    $region8: #{tpu_custom_call.1} parent=1 // pred_region
      %s25 = ssub.s32 512, 512
      %26 = vsyncadd [#allocation6], %s25
      %s27 = sshll.u32 [#allocation5], 4
      %s28 = int_to_ptr.vmem [resolvable:$true] %s27
      %33 = dma.hbm_to_vmem [thread:$0]  %s1, 512, %s28, [#allocation6], 128, 128, 8
    $region9: #{tpu_custom_call.1} parent=1 // pred_fallthru
      _
    // Predicated region
    $region10: #{tpu_custom_call.1} parent=1 // pred_check
      _
    $region11: #{tpu_custom_call.1} parent=1 // pred_check_branch
      %35 = sbr.rel (0) target = $region13
    $region12: #{tpu_custom_call.1} parent=1 // pred_region
      %36 = dma.done [#allocation3], 256
    $region13: #{tpu_custom_call.1} parent=1 // pred_fallthru
      _
    // Predicated region
    $region14: #{tpu_custom_call.1} parent=1 // pred_check
      _
    $region15: #{tpu_custom_call.1} parent=1 // pred_check_branch
      %38 = sbr.rel (0) target = $region17
    $region16: #{tpu_custom_call.1} parent=1 // pred_region
      %39 = dma.done [#allocation6], 512
    $region17: #{tpu_custom_call.1} parent=1 // pred_fallthru
      _
    %v40 = vld [vmem:[#allocation2] sm:$0xff]
    %v41 = vld [vmem:[#allocation2 + $0x8] sm:$0xff]
    %v42 = vld [vmem:[#allocation5] sm:$0xff]
    %v43 = vld [vmem:[#allocation5 + $0x8] sm:$0xff]
    %v44 = vld [vmem:[#allocation5 + $0x10] sm:$0xff]
    %v45 = vld [vmem:[#allocation5 + $0x18] sm:$0xff]
    %vm46 = vcmask 261120
    %v48 = vsel %vm46, %v40, 0
    %v51 = vsel %vm46, %v41, 0
    %53 = vmatprep.subr.mxu0 0.0
    %54 = vmatpush1.msra.mxu0 0.0
    %55 = vmatprep.subr.mxu0 0.0
    %56 = vmatpush1.msra.mxu0 0.0
    %57 = vmatprep.subr.mxu0 0.0
    %58 = vmatpush1.msra.mxu0 0.0
    %59 = vmatprep.subr.mxu0 0.0
    %60 = vmatpush1.msra.mxu0 0.0
    %61 = vmatprep.subr.mxu0 0.0
    %62 = vmatpush1.msra.mxu0 0.0
    %63 = vmatprep.subr.mxu0 0.0
    %64 = vmatpush1.msra.mxu0 0.0
    %65 = vmatprep.subr.mxu0 0.0
    %66 = vmatpush1.msra.mxu0 0.0
    %67 = vmatprep.subr.mxu0 0.0
    %68 = vmatpush1.msra.mxu0 0.0
    %69 = vmatprep.subr.mxu0 0.0
    %70 = vmatpush1.msra.mxu0 0.0
    %71 = vmatprep.subr.mxu0 0.0
    %72 = vmatpush1.msra.mxu0 0.0
    %73 = vmatprep.subr.mxu0 0.0
    %74 = vmatpush1.msra.mxu0 0.0
    %75 = vmatprep.subr.mxu0 0.0
    %76 = vmatpush1.msra.mxu0 0.0
    %77 = vmatprep.subr.mxu0 0.0
    %78 = vmatpush1.msra.mxu0 %v45
    %79 = vmatprep.subr.mxu0 0.0
    %80 = vmatpush1.msra.mxu0 %v44
    %81 = vmatprep.subr.mxu0 0.0
    %82 = vmatpush1.msra.mxu0 %v43
    %83 = vmatprep.subr.mxu0 0.0
    %84 = vmatpush1.msra.mxu0 %v42
    %85 = vmatprep.subr.mxu0 0.0
    %86 = vmatpush2.msra.mxu0 0.0
    %87 = vmatprep.subr.mxu0 0.0
    %88 = vmatpush2.msra.mxu0 0.0
    %89 = vmatprep.subr.mxu0 0.0
    %90 = vmatpush2.msra.mxu0 0.0
    %91 = vmatprep.subr.mxu0 0.0
    %92 = vmatpush2.msra.mxu0 0.0
    %93 = vmatprep.subr.mxu0 0.0
    %94 = vmatpush2.msra.mxu0 0.0
    %95 = vmatprep.subr.mxu0 0.0
    %96 = vmatpush2.msra.mxu0 0.0
    %97 = vmatprep.subr.mxu0 0.0
    %98 = vmatpush2.msra.mxu0 0.0
    %99 = vmatprep.subr.mxu0 0.0
    %100 = vmatpush2.msra.mxu0 0.0
    %101 = vmatprep.subr.mxu0 0.0
    %102 = vmatpush2.msra.mxu0 0.0
    %103 = vmatprep.subr.mxu0 0.0
    %104 = vmatpush2.msra.mxu0 0.0
    %105 = vmatprep.subr.mxu0 0.0
    %106 = vmatpush2.msra.mxu0 0.0
    %107 = vmatprep.subr.mxu0 0.0
    %108 = vmatpush2.msra.mxu0 0.0
    %109 = vmatprep.subr.mxu0 0.0
    %110 = vmatpush2.msra.mxu0 0.0
    %111 = vmatprep.subr.mxu0 0.0
    %112 = vmatpush2.msra.mxu0 0.0
    %113 = vmatprep.subr.mxu0 0.0
    %114 = vmatpush2.msra.mxu0 0.0
    %115 = vmatprep.subr.mxu0 0.0
    %116 = vmatpush2.msra.mxu0 0.0
    %117 = vmatprep.mubr.f32.mxu0 0.0
    %118 = vmatmul.mubr.f32.gmra.mxu0 %v48
    %v119 = vpop.f32.mrf.mxu0
    %v120 = vadd.f32 0.0, %v119
    %v121 = vpop.f32.mrf.mxu0
    %122 = vmatprep.mubr.f32.mxu0 0.0
    %123 = vmatmul.mubr.f32.gmra.mxu0 %v51
    %v124 = vpop.f32.mrf.mxu0
    %v125 = vadd.f32 0.0, %v124
    %v126 = vpop.f32.mrf.mxu0
    %127 = vdwg.mxu0
    %128 = vst.msk [vmem:[#allocation7] sm:$0xff] %vm46, %v120
    %129 = vst.msk [vmem:[#allocation7 + $0x8] sm:$0xff] %vm46, %v125
    // Predicated region
    $region18: #{tpu_custom_call.1} parent=1 // pred_check
      _
    $region19: #{tpu_custom_call.1} parent=1 // pred_check_branch
      %131 = sbr.rel (0) target = $region21
    $region20: #{tpu_custom_call.1} parent=1 // pred_region
      %s133 = ssub.s32 256, 256
      %134 = vsyncadd [#allocation4], %s133
      %s135 = sshll.u32 [#allocation7], 4
      %s136 = int_to_ptr.vmem [resolvable:$true] %s135
      %141 = dma.vmem_to_hbm [thread:$0]  %s136, 256, %s2, [#allocation4], 128, 128, 8
    $region21: #{tpu_custom_call.1} parent=1 // pred_fallthru
      _
    // Predicated region
    $region22: #{tpu_custom_call.1} parent=1 // pred_check
      _
    $region23: #{tpu_custom_call.1} parent=1 // pred_check_branch
      %143 = sbr.rel (0) target = $region25
    $region24: #{tpu_custom_call.1} parent=1 // pred_region
      %144 = dma.done [#allocation4], 256
    $region25: #{tpu_custom_call.1} parent=1 // pred_fallthru
      _
    %145 = vsyncpa [#allocation3], 1
    %146 = vsyncpa [#allocation6], 1
    %147 = vsyncpa [#allocation4], 1

</llo_original>
